<compile_context>
chip_gen: v7x
topology: tpu7x:2x2x1
jax: 0.10.0
libtpu: 0.0.40
codegen_flags: <defaults>
</compile_context>

<pallas_src>
import functools

import jax
import jax.numpy as jnp
from jax.experimental import pallas as pl
from jax.experimental.pallas import tpu as pltpu


def _round_up(x, m):
    return (x + m - 1) // m * m


def rectified_flow_mlp_kernel(x_ref, t_ref, w1x_ref, w1t_ref, b1_ref,
                              w2_ref, b2_ref, o_ref):
    # xt = concat([x, t], axis=1); h = relu(xt @ W1 + b1); out = h @ W2 + b2
    # concat([x, t]) @ W1 == x @ W1[:dim]  +  t * W1[dim]   (exact rank-1 split)
    h = jnp.dot(x_ref[...], w1x_ref[...],
                preferred_element_type=jnp.float32)        # MXU: bf16 in, f32 acc
    h = h + t_ref[...] * w1t_ref[...]                      # VPU rank-1 update (f32)
    h = h + b1_ref[...]                                    # (1, hidden) broadcast
    h = jnp.maximum(h, 0.0)                                # ReLU, f32 on VPU

    out = jnp.dot(h.astype(jnp.bfloat16), w2_ref[...],
                  preferred_element_type=jnp.float32)      # MXU: bf16 in, f32 acc
    out = out + b2_ref[...]
    o_ref[...] = out.astype(o_ref.dtype)


@functools.partial(jax.jit, static_argnames=("tile_b",))
def rectified_flow_forward(x, t, params, tile_b=256):
    """Equivalent of RectifiedFlow.forward(x, t) with a 2-layer MLP model."""
    B = x.shape[0]
    # Glue: the .view() reshapes from the PyTorch forward.
    x2 = x.reshape(B, -1)                                  # (B, dim)
    t2 = t.reshape(B, -1).astype(jnp.float32)              # (B, 1)
    dim = x2.shape[1]

    w1, b1, w2, b2 = params["w1"], params["b1"], params["w2"], params["b2"]
    hidden = w1.shape[1]

    # Pad feature dims to the lane width (128): lane-dense loads/stores and
    # MXU-friendly shapes for any dim / hidden. Zero padding is exact:
    # zero weight rows/cols + zero bias + ReLU(0)=0 contribute nothing.
    dim_p = _round_up(dim, 128)
    hid_p = _round_up(hidden, 128)

    # Split W1 (dim+1, hidden) into the x part (bf16, MXU) and t part (f32, VPU).
    w1x = w1[:dim, :].astype(jnp.bfloat16)                 # (dim, hidden)
    w1t = w1[dim:, :].reshape(1, hidden).astype(jnp.float32)
    b1_2d = b1.reshape(1, hidden).astype(jnp.float32)
    w2_b = w2.astype(jnp.bfloat16)                         # (hidden, dim)
    b2_2d = b2.reshape(1, dim).astype(jnp.float32)

    if dim_p != dim or hid_p != hidden:
        w1x = jnp.pad(w1x, ((0, dim_p - dim), (0, hid_p - hidden)))
        w1t = jnp.pad(w1t, ((0, 0), (0, hid_p - hidden)))
        b1_2d = jnp.pad(b1_2d, ((0, 0), (0, hid_p - hidden)))
        w2_b = jnp.pad(w2_b, ((0, hid_p - hidden), (0, dim_p - dim)))
        b2_2d = jnp.pad(b2_2d, ((0, 0), (0, dim_p - dim)))

    # Pad the batch up to a multiple of the tile size (grid-friendly).
    n_tiles = pl.cdiv(B, tile_b)
    b_pad = n_tiles * tile_b
    x_b = x2.astype(jnp.bfloat16)                          # halve input HBM traffic
    if b_pad != B or dim_p != dim:
        x_b = jnp.pad(x_b, ((0, b_pad - B), (0, dim_p - dim)))
    if b_pad != B:
        t2 = jnp.pad(t2, ((0, b_pad - B), (0, 0)))

    out = pl.pallas_call(
        rectified_flow_mlp_kernel,
        out_shape=jax.ShapeDtypeStruct((b_pad, dim_p), jnp.float32),
        grid=(n_tiles,),
        in_specs=[
            pl.BlockSpec((tile_b, dim_p), lambda i: (i, 0)),   # x   (tiled, bf16)
            pl.BlockSpec((tile_b, 1), lambda i: (i, 0)),       # t   (tiled, f32)
            pl.BlockSpec((dim_p, hid_p), lambda i: (0, 0)),    # W1[:dim]  resident
            pl.BlockSpec((1, hid_p), lambda i: (0, 0)),        # W1[dim:]  resident
            pl.BlockSpec((1, hid_p), lambda i: (0, 0)),        # b1        resident
            pl.BlockSpec((hid_p, dim_p), lambda i: (0, 0)),    # W2        resident
            pl.BlockSpec((1, dim_p), lambda i: (0, 0)),        # b2        resident
        ],
        out_specs=pl.BlockSpec((tile_b, dim_p), lambda i: (i, 0)),
        compiler_params=pltpu.CompilerParams(
            dimension_semantics=("parallel",),  # v7x: shard batch over both TCs
        ),
    )(x_b, t2, w1x, w1t, b1_2d, w2_b, b2_2d)

    if b_pad != B or dim_p != dim:
        out = out[:B, :dim]
    return out


def init_params(key, dim, hidden):
    k1, k2, k3, k4 = jax.random.split(key, 4)
    in_dim = dim + 1
    # Deterministic, PyTorch-Linear-like scaled init (stored in f32).
    w1 = jax.random.uniform(k1, (in_dim, hidden), jnp.float32,
                            -1.0, 1.0) / jnp.sqrt(in_dim)
    b1 = jax.random.uniform(k2, (hidden,), jnp.float32,
                            -1.0, 1.0) / jnp.sqrt(in_dim)
    w2 = jax.random.uniform(k3, (hidden, dim), jnp.float32,
                            -1.0, 1.0) / jnp.sqrt(hidden)
    b2 = jax.random.uniform(k4, (dim,), jnp.float32,
                            -1.0, 1.0) / jnp.sqrt(hidden)
    return {"w1": w1, "b1": b1, "w2": w2, "b2": b2}


def reference_forward(x, t, params):
    # Pure-JAX f32 reference of RectifiedFlow.forward with the MLP model.
    B = x.shape[0]
    xt = jnp.concatenate([x.reshape(B, -1), t.reshape(B, -1)],
                         axis=1).astype(jnp.float32)
    h = jnp.maximum(xt @ params["w1"] + params["b1"], 0.0)
    return h @ params["w2"] + params["b2"]


def _check(B, DIM, HIDDEN, seed):
    key = jax.random.PRNGKey(seed)
    kx, kt, kp = jax.random.split(key, 3)
    x = jax.random.normal(kx, (B, DIM), jnp.float32)   # flattened sample
    t = jax.random.uniform(kt, (B, 1), jnp.float32)    # per-sample time
    params = init_params(kp, DIM, HIDDEN)

    out = jax.block_until_ready(rectified_flow_forward(x, t, params))
    ref = reference_forward(x, t, params)
    assert out.shape == (B, DIM)
    # bf16 MXU operands with f32 accumulation -> loosened tolerance vs f32 ref.
    assert jnp.allclose(out, ref, atol=5e-2, rtol=5e-2), (
        f"mismatch vs reference: max abs err {jnp.max(jnp.abs(out - ref))}")


if __name__ == "__main__":
    # Main case: dim / hidden multiples of 128 and two grid steps over batch.
    _check(B=512, DIM=128, HIDDEN=256, seed=0)
    # Unaligned case: exercises the feature/hidden/batch padding path.
    _check(B=100, DIM=96, HIDDEN=200, seed=0)
    print("KERNEL_OK")
</pallas_src>

<mosaic_0001>
module attributes {stable_mosaic.version = 11 : i64} {
  func.func @rectified_flow_mlp_kernel(%arg0: i32, %arg1: memref<256x128xbf16, #tpu.memory_space<vmem>>, %arg2: memref<256x1xf32, #tpu.memory_space<vmem>>, %arg3: memref<128x256xbf16, #tpu.memory_space<vmem>>, %arg4: memref<1x256xf32, #tpu.memory_space<vmem>>, %arg5: memref<1x256xf32, #tpu.memory_space<vmem>>, %arg6: memref<256x128xbf16, #tpu.memory_space<vmem>>, %arg7: memref<1x128xf32, #tpu.memory_space<vmem>>, %arg8: memref<256x128xf32, #tpu.memory_space<vmem>>) attributes {dimension_semantics = [#tpu.dimension_semantics<parallel>], iteration_bounds = array<i64: 2>, scalar_prefetch = 0 : i64, scratch_operands = 0 : i64, tpu.core_type = #tpu.core_type<tc>, window_params = [{transform_indices = @transform_0, window_bounds = array<i64: 256, 128>}, {transform_indices = @transform_1, window_bounds = array<i64: 256, 1>}, {pipeline_mode = #tpu.pipeline_mode<synchronous>, transform_indices = @transform_2, window_bounds = array<i64: 128, 256>}, {pipeline_mode = #tpu.pipeline_mode<synchronous>, transform_indices = @transform_3, window_bounds = array<i64: 1, 256>}, {pipeline_mode = #tpu.pipeline_mode<synchronous>, transform_indices = @transform_4, window_bounds = array<i64: 1, 256>}, {pipeline_mode = #tpu.pipeline_mode<synchronous>, transform_indices = @transform_5, window_bounds = array<i64: 256, 128>}, {pipeline_mode = #tpu.pipeline_mode<synchronous>, transform_indices = @transform_6, window_bounds = array<i64: 1, 128>}, {transform_indices = @transform_7, window_bounds = array<i64: 256, 128>}]} {
    %c0 = arith.constant 0 : index
    %c0_0 = arith.constant 0 : index
    %0 = vector.load %arg1[%c0, %c0_0] : memref<256x128xbf16, #tpu.memory_space<vmem>>, vector<256x128xbf16>
    %c0_1 = arith.constant 0 : index
    %c0_2 = arith.constant 0 : index
    %1 = vector.load %arg3[%c0_1, %c0_2] : memref<128x256xbf16, #tpu.memory_space<vmem>>, vector<128x256xbf16>
    %cst = arith.constant dense<0.000000e+00> : vector<256x256xf32>
    %2 = tpu.matmul %0, %1, %cst {dimension_numbers = #tpu.dot_dimension_numbers<[1], [0], [0], [1], [0, 0, 1, 1], [], []>} : vector<256x128xbf16>, vector<128x256xbf16>, vector<256x256xf32> -> vector<256x256xf32>
    %c0_3 = arith.constant 0 : index
    %c0_4 = arith.constant 0 : index
    %3 = vector.load %arg2[%c0_3, %c0_4] : memref<256x1xf32, #tpu.memory_space<vmem>>, vector<256x1xf32>
    %c0_5 = arith.constant 0 : index
    %c0_6 = arith.constant 0 : index
    %4 = vector.load %arg4[%c0_5, %c0_6] : memref<1x256xf32, #tpu.memory_space<vmem>>, vector<1x256xf32>
    %5 = vector.broadcast %3 : vector<256x1xf32> to vector<256x256xf32>
    %6 = vector.broadcast %4 : vector<1x256xf32> to vector<256x256xf32>
    %7 = arith.mulf %5, %6 : vector<256x256xf32>
    %8 = arith.addf %2, %7 : vector<256x256xf32>
    %c0_7 = arith.constant 0 : index
    %c0_8 = arith.constant 0 : index
    %9 = vector.load %arg5[%c0_7, %c0_8] : memref<1x256xf32, #tpu.memory_space<vmem>>, vector<1x256xf32>
    %10 = vector.broadcast %9 : vector<1x256xf32> to vector<256x256xf32>
    %11 = arith.addf %8, %10 : vector<256x256xf32>
    %cst_9 = arith.constant 0.000000e+00 : f32
    %12 = vector.broadcast %cst_9 : f32 to vector<256x256xf32>
    %13 = arith.maximumf %11, %12 : vector<256x256xf32>
    %14 = arith.truncf %13 : vector<256x256xf32> to vector<256x256xbf16>
    %c0_10 = arith.constant 0 : index
    %c0_11 = arith.constant 0 : index
    %15 = vector.load %arg6[%c0_10, %c0_11] : memref<256x128xbf16, #tpu.memory_space<vmem>>, vector<256x128xbf16>
    %cst_12 = arith.constant dense<0.000000e+00> : vector<256x128xf32>
    %16 = tpu.matmul %14, %15, %cst_12 {dimension_numbers = #tpu.dot_dimension_numbers<[1], [0], [0], [1], [0, 0, 1, 1], [], []>} : vector<256x256xbf16>, vector<256x128xbf16>, vector<256x128xf32> -> vector<256x128xf32>
    %c0_13 = arith.constant 0 : index
    %c0_14 = arith.constant 0 : index
    %17 = vector.load %arg7[%c0_13, %c0_14] : memref<1x128xf32, #tpu.memory_space<vmem>>, vector<1x128xf32>
    %18 = vector.broadcast %17 : vector<1x128xf32> to vector<256x128xf32>
    %19 = arith.addf %16, %18 : vector<256x128xf32>
    %c0_15 = arith.constant 0 : index
    %c0_16 = arith.constant 0 : index
    %20 = vector.load %arg8[%c0_15, %c0_16] : memref<256x128xf32, #tpu.memory_space<vmem>>, vector<256x128xf32>
    tpu.vector_store %arg8[%c0_15, %c0_16], %19 {strides = array<i32>} : memref<256x128xf32, #tpu.memory_space<vmem>>, vector<256x128xf32>,
    return
  }
  func.func @transform_0(%arg0: i32) -> (i32, i32) {
    %c0_i32 = arith.constant 0 : i32
    %c0_i32_0 = arith.constant 0 : i32
    return %arg0, %c0_i32 : i32, i32
  }
  func.func @transform_1(%arg0: i32) -> (i32, i32) {
    %c0_i32 = arith.constant 0 : i32
    %c0_i32_0 = arith.constant 0 : i32
    return %arg0, %c0_i32 : i32, i32
  }
  func.func @transform_2(%arg0: i32) -> (i32, i32) {
    %c0_i32 = arith.constant 0 : i32
    %c0_i32_0 = arith.constant 0 : i32
    %c0_i32_1 = arith.constant 0 : i32
    return %c0_i32, %c0_i32_0 : i32, i32
  }
  func.func @transform_3(%arg0: i32) -> (i32, i32) {
    %c0_i32 = arith.constant 0 : i32
    %c0_i32_0 = arith.constant 0 : i32
    %c0_i32_1 = arith.constant 0 : i32
    return %c0_i32, %c0_i32_0 : i32, i32
  }
  func.func @transform_4(%arg0: i32) -> (i32, i32) {
    %c0_i32 = arith.constant 0 : i32
    %c0_i32_0 = arith.constant 0 : i32
    %c0_i32_1 = arith.constant 0 : i32
    return %c0_i32, %c0_i32_0 : i32, i32
  }
  func.func @transform_5(%arg0: i32) -> (i32, i32) {
    %c0_i32 = arith.constant 0 : i32
    %c0_i32_0 = arith.constant 0 : i32
    %c0_i32_1 = arith.constant 0 : i32
    return %c0_i32, %c0_i32_0 : i32, i32
  }
  func.func @transform_6(%arg0: i32) -> (i32, i32) {
    %c0_i32 = arith.constant 0 : i32
    %c0_i32_0 = arith.constant 0 : i32
    %c0_i32_1 = arith.constant 0 : i32
    return %c0_i32, %c0_i32_0 : i32, i32
  }
  func.func @transform_7(%arg0: i32) -> (i32, i32) {
    %c0_i32 = arith.constant 0 : i32
    %c0_i32_0 = arith.constant 0 : i32
    return %arg0, %c0_i32 : i32, i32
  }
}

</mosaic_0001>

<llo_original>
// kernel: rectified_flow_forward.1
$region0: #{rectified_flow_forward.1}
  #allocation0 [shape = 'u32[]', space=smem, size = 0x4, offset = 0x4, fixed_abs, tag = 'smem constant byte address 0x4 - core index']
  #allocation1 [shape = 'u32[144,128]{1,0:T(1,128)}', space=vmem, size = 0x12000, scoped, tag = 'internal scratch']
  %s0 = inlined_call_operand.vmem [shape: bf16[512,128], index: 0, kind: input, shape index: {}]
  %s1 = inlined_call_operand.vmem [shape: f32[512,1], index: 1, kind: input, shape index: {}]
  %s2 = inlined_call_operand.vmem [shape: bf16[128,256], index: 2, kind: input, shape index: {}]
  %s3 = inlined_call_operand.vmem [shape: f32[1,256], index: 3, kind: input, shape index: {}]
  %s4 = inlined_call_operand.vmem [shape: f32[1,256], index: 4, kind: input, shape index: {}]
  %s5 = inlined_call_operand.vmem [shape: bf16[256,128], index: 5, kind: input, shape index: {}]
  %s6 = inlined_call_operand.vmem [shape: f32[1,128], index: 6, kind: input, shape index: {}]
  %s7 = inlined_call_operand.hbm [shape: f32[512,128], index: 7, kind: output, shape index: {}]
  %s8 = sld [smem:[#allocation0]]
  $region61: #{rectified_flow_forward.1} parent=0
    _
  %s10 = ssub.s32 1, %s8
  %s11 = scalar_select 0, %s10, %s8
  $region1: #{rectified_flow_forward.1} parent=0
    #allocation2 [shape = 'u8[262144]{0}', space=vmem, size = 0x40000, scoped, tag = 'output window, operand 0']
    #allocation3 [shape = 's32[2]{0}', space=sflag, size = 0x8, scoped, tag = 'scoped memory for rectified_flow_forward.1']
    %12 = vsyncpa [#allocation3], 0
    %s13 = scalar_lea.sflag [#allocation3], 1
    %14 = vsyncpa %s13, 0
    loop: start=0, step=1, limit=4
    $region2: #{rectified_flow_forward.1} parent=1 // loop_pre_header
      _
    $region3: #{rectified_flow_forward.1} parent=1 // loop_header
      %s16 = sphi 0, %s20
      %p17 = scmp.ge.s32.totalorder %s16, 4
      %s26 = sphi 0, %s28
      %s29 = sphi 0, %s26
      %s30 = sphi 0, %s29
      %s46 = sphi 0, %s30
      %s52 = sphi 0, %s54
      %s55 = sphi 0, %s52
      %s56 = sphi 0, %s55
      %s72 = sphi 0, %s56
      %s76 = sphi 0, %s76
      %s78 = sphi 0, %s76
      %s79 = sphi 0, %s78
      %s93 = sphi 0, %s79
      %s97 = sphi 0, %s97
      %s99 = sphi 0, %s97
      %s100 = sphi 0, %s99
      %s114 = sphi 0, %s100
      %s118 = sphi 0, %s118
      %s120 = sphi 0, %s118
      %s121 = sphi 0, %s120
      %s135 = sphi 0, %s121
      %s139 = sphi 0, %s139
      %s141 = sphi 0, %s139
      %s142 = sphi 0, %s141
      %s156 = sphi 0, %s142
      %s160 = sphi 0, %s160
      %s162 = sphi 0, %s160
      %s163 = sphi 0, %s162
      %s177 = sphi 0, %s163
      %s183 = sphi 0, %s185
      %s186 = sphi 0, %s183
      %s187 = sphi 0, %s186
      %s203 = sphi 0, %s187
    $region4: #{rectified_flow_forward.1} parent=1 // loop_header_branch
      %19 = sbr.rel (%p17) target = $region8
    $region5: #{rectified_flow_forward.1} parent=1 // loop_body
      %s21 = ssub.s32 %s16, 1
      %s22 = ssub.s32 %s16, 2
      %s23 = sadd.s32 %s16, 1
      %s24 = ssub.s32 %s16, %s23
      %p25 = scmp.eq.s32.totalorder %s24, 0
      %s27 = sadd.s32 %s26, 1
      %s28 = scalar_select %p25, %s26, %s27
      %p31 = pneg %p25
      %p32 = scmp.eq.s32.totalorder %s16, 1
      %p33 = por %p31, %p32
      %p34 = scmp.ne.s32.totalorder %s26, %s29
      %p35 = scmp.eq.s32.totalorder %s16, 0
      %p36 = por %p34, %p35
      %p37 = scmp.ne.s32.totalorder %s26, %s29
      %p38 = scmp.eq.s32.totalorder %s21, 1
      %p39 = por %p37, %p38
      %p40 = scmp.ne.s32.totalorder %s29, %s30
      %p41 = scmp.eq.s32.totalorder %s21, 0
      %p42 = por %p40, %p41
      %p43 = scmp.ne.s32.totalorder %s29, %s30
      %p44 = scmp.eq.s32.totalorder %s22, 1
      %p45 = por %p43, %p44
      %p47 = scmp.ne.s32.totalorder %s30, %s46
      %p48 = scmp.eq.s32.totalorder %s22, 0
      %p49 = por %p47, %p48
      %s50 = ssub.s32 %s16, %s23
      %p51 = scmp.eq.s32.totalorder %s50, 0
      %s53 = sadd.s32 %s52, 1
      %s54 = scalar_select %p51, %s52, %s53
      %p57 = pneg %p51
      %p58 = scmp.eq.s32.totalorder %s16, 1
      %p59 = por %p57, %p58
      %p60 = scmp.ne.s32.totalorder %s52, %s55
      %p61 = scmp.eq.s32.totalorder %s16, 0
      %p62 = por %p60, %p61
      %p63 = scmp.ne.s32.totalorder %s52, %s55
      %p64 = scmp.eq.s32.totalorder %s21, 1
      %p65 = por %p63, %p64
      %p66 = scmp.ne.s32.totalorder %s55, %s56
      %p67 = scmp.eq.s32.totalorder %s21, 0
      %p68 = por %p66, %p67
      %p69 = scmp.ne.s32.totalorder %s55, %s56
      %p70 = scmp.eq.s32.totalorder %s22, 1
      %p71 = por %p69, %p70
      %p73 = scmp.ne.s32.totalorder %s56, %s72
      %p74 = scmp.eq.s32.totalorder %s22, 0
      %p75 = por %p73, %p74
      %s77 = sadd.s32 %s76, 1
      %p80 = scmp.eq.s32.totalorder %s16, 1
      %p81 = scmp.ne.s32.totalorder %s76, %s78
      %p82 = scmp.eq.s32.totalorder %s16, 0
      %p83 = por %p81, %p82
      %p84 = scmp.ne.s32.totalorder %s76, %s78
      %p85 = scmp.eq.s32.totalorder %s21, 1
      %p86 = por %p84, %p85
      %p87 = scmp.ne.s32.totalorder %s78, %s79
      %p88 = scmp.eq.s32.totalorder %s21, 0
      %p89 = por %p87, %p88
      %p90 = scmp.ne.s32.totalorder %s78, %s79
      %p91 = scmp.eq.s32.totalorder %s22, 1
      %p92 = por %p90, %p91
      %p94 = scmp.ne.s32.totalorder %s79, %s93
      %p95 = scmp.eq.s32.totalorder %s22, 0
      %p96 = por %p94, %p95
      %s98 = sadd.s32 %s97, 1
      %p101 = scmp.eq.s32.totalorder %s16, 1
      %p102 = scmp.ne.s32.totalorder %s97, %s99
      %p103 = scmp.eq.s32.totalorder %s16, 0
      %p104 = por %p102, %p103
      %p105 = scmp.ne.s32.totalorder %s97, %s99
      %p106 = scmp.eq.s32.totalorder %s21, 1
      %p107 = por %p105, %p106
      %p108 = scmp.ne.s32.totalorder %s99, %s100
      %p109 = scmp.eq.s32.totalorder %s21, 0
      %p110 = por %p108, %p109
      %p111 = scmp.ne.s32.totalorder %s99, %s100
      %p112 = scmp.eq.s32.totalorder %s22, 1
      %p113 = por %p111, %p112
      %p115 = scmp.ne.s32.totalorder %s100, %s114
      %p116 = scmp.eq.s32.totalorder %s22, 0
      %p117 = por %p115, %p116
      %s119 = sadd.s32 %s118, 1
      %p122 = scmp.eq.s32.totalorder %s16, 1
      %p123 = scmp.ne.s32.totalorder %s118, %s120
      %p124 = scmp.eq.s32.totalorder %s16, 0
      %p125 = por %p123, %p124
      %p126 = scmp.ne.s32.totalorder %s118, %s120
      %p127 = scmp.eq.s32.totalorder %s21, 1
      %p128 = por %p126, %p127
      %p129 = scmp.ne.s32.totalorder %s120, %s121
      %p130 = scmp.eq.s32.totalorder %s21, 0
      %p131 = por %p129, %p130
      %p132 = scmp.ne.s32.totalorder %s120, %s121
      %p133 = scmp.eq.s32.totalorder %s22, 1
      %p134 = por %p132, %p133
      %p136 = scmp.ne.s32.totalorder %s121, %s135
      %p137 = scmp.eq.s32.totalorder %s22, 0
      %p138 = por %p136, %p137
      %s140 = sadd.s32 %s139, 1
      %p143 = scmp.eq.s32.totalorder %s16, 1
      %p144 = scmp.ne.s32.totalorder %s139, %s141
      %p145 = scmp.eq.s32.totalorder %s16, 0
      %p146 = por %p144, %p145
      %p147 = scmp.ne.s32.totalorder %s139, %s141
      %p148 = scmp.eq.s32.totalorder %s21, 1
      %p149 = por %p147, %p148
      %p150 = scmp.ne.s32.totalorder %s141, %s142
      %p151 = scmp.eq.s32.totalorder %s21, 0
      %p152 = por %p150, %p151
      %p153 = scmp.ne.s32.totalorder %s141, %s142
      %p154 = scmp.eq.s32.totalorder %s22, 1
      %p155 = por %p153, %p154
      %p157 = scmp.ne.s32.totalorder %s142, %s156
      %p158 = scmp.eq.s32.totalorder %s22, 0
      %p159 = por %p157, %p158
      %s161 = sadd.s32 %s160, 1
      %p164 = scmp.eq.s32.totalorder %s16, 1
      %p165 = scmp.ne.s32.totalorder %s160, %s162
      %p166 = scmp.eq.s32.totalorder %s16, 0
      %p167 = por %p165, %p166
      %p168 = scmp.ne.s32.totalorder %s160, %s162
      %p169 = scmp.eq.s32.totalorder %s21, 1
      %p170 = por %p168, %p169
      %p171 = scmp.ne.s32.totalorder %s162, %s163
      %p172 = scmp.eq.s32.totalorder %s21, 0
      %p173 = por %p171, %p172
      %p174 = scmp.ne.s32.totalorder %s162, %s163
      %p175 = scmp.eq.s32.totalorder %s22, 1
      %p176 = por %p174, %p175
      %p178 = scmp.ne.s32.totalorder %s163, %s177
      %p179 = scmp.eq.s32.totalorder %s22, 0
      %p180 = por %p178, %p179
      %s181 = ssub.s32 %s16, %s23
      %p182 = scmp.eq.s32.totalorder %s181, 0
      %s184 = sadd.s32 %s183, 1
      %s185 = scalar_select %p182, %s183, %s184
      %p188 = pneg %p182
      %p189 = scmp.eq.s32.totalorder %s16, 1
      %p190 = por %p188, %p189
      %p191 = scmp.ne.s32.totalorder %s183, %s186
      %p192 = scmp.eq.s32.totalorder %s16, 0
      %p193 = por %p191, %p192
      %p194 = scmp.ne.s32.totalorder %s183, %s186
      %p195 = scmp.eq.s32.totalorder %s21, 1
      %p196 = por %p194, %p195
      %p197 = scmp.ne.s32.totalorder %s186, %s187
      %p198 = scmp.eq.s32.totalorder %s21, 0
      %p199 = por %p197, %p198
      %p200 = scmp.ne.s32.totalorder %s186, %s187
      %p201 = scmp.eq.s32.totalorder %s22, 1
      %p202 = por %p200, %p201
      %p204 = scmp.ne.s32.totalorder %s187, %s203
      %p205 = scmp.eq.s32.totalorder %s22, 0
      %p206 = por %p204, %p205
      %p207 = scmp.le.s32.totalorder 1, %s16
      %p208 = scmp.lt.s32.totalorder %s16, 3
      %p209 = pnand %p207, %p208
      %p210 = pneg %p209
      // Predicated region
      $region9: #{rectified_flow_forward.1} parent=5 // pred_check
        _
      $region10: #{rectified_flow_forward.1} parent=5 // pred_check_branch
        %212 = sbr.rel (%p209) target = $region12
      $region11: #{rectified_flow_forward.1} parent=5 // pred_region
        %s213 = ssub.s32 %s16, 1
        // Predicated region
        $region13: #{rectified_flow_forward.1} parent=11 // pred_check
          %p214 = pneg %p89
        $region14: #{rectified_flow_forward.1} parent=11 // pred_check_branch
          %216 = sbr.rel (%p214) target = $region16
        $region15: #{rectified_flow_forward.1} parent=11 // pred_region
          _
        $region16: #{rectified_flow_forward.1} parent=11 // pred_fallthru
          _
        // Predicated region
        $region17: #{rectified_flow_forward.1} parent=11 // pred_check
          %p217 = pneg %p110
        $region18: #{rectified_flow_forward.1} parent=11 // pred_check_branch
          %219 = sbr.rel (%p217) target = $region20
        $region19: #{rectified_flow_forward.1} parent=11 // pred_region
          _
        $region20: #{rectified_flow_forward.1} parent=11 // pred_fallthru
          _
        // Predicated region
        $region21: #{rectified_flow_forward.1} parent=11 // pred_check
          %p220 = pneg %p131
        $region22: #{rectified_flow_forward.1} parent=11 // pred_check_branch
          %222 = sbr.rel (%p220) target = $region24
        $region23: #{rectified_flow_forward.1} parent=11 // pred_region
          _
        $region24: #{rectified_flow_forward.1} parent=11 // pred_fallthru
          _
        // Predicated region
        $region25: #{rectified_flow_forward.1} parent=11 // pred_check
          %p223 = pneg %p152
        $region26: #{rectified_flow_forward.1} parent=11 // pred_check_branch
          %225 = sbr.rel (%p223) target = $region28
        $region27: #{rectified_flow_forward.1} parent=11 // pred_region
          _
        $region28: #{rectified_flow_forward.1} parent=11 // pred_fallthru
          _
        // Predicated region
        $region29: #{rectified_flow_forward.1} parent=11 // pred_check
          %p226 = pneg %p173
        $region30: #{rectified_flow_forward.1} parent=11 // pred_check_branch
          %228 = sbr.rel (%p226) target = $region32
        $region31: #{rectified_flow_forward.1} parent=11 // pred_region
          _
        $region32: #{rectified_flow_forward.1} parent=11 // pred_fallthru
          _
      $region12: #{rectified_flow_forward.1} parent=5 // pred_fallthru
        _
      %p229 = scmp.lt.s32.totalorder %s16, 2
      // Predicated region
      $region33: #{rectified_flow_forward.1} parent=5 // pred_check
        %p230 = pneg %p229
      $region34: #{rectified_flow_forward.1} parent=5 // pred_check_branch
        %232 = sbr.rel (%p230) target = $region36
      $region35: #{rectified_flow_forward.1} parent=5 // pred_region
        // Predicated region
        $region37: #{rectified_flow_forward.1} parent=35 // pred_check
          %p233 = pneg %p36
        $region38: #{rectified_flow_forward.1} parent=35 // pred_check_branch
          %235 = sbr.rel (%p233) target = $region40
        $region39: #{rectified_flow_forward.1} parent=35 // pred_region
          %s236 = smul.u32 32, %s16
          %p237 = scmp.lt.s32.totalorder %s236, 63
          %s238 = scalar_select %p237, %s236, 63
          %s239 = smul.addr %s238, 4
          %s240 = scalar_lea.vmem %s0, %s239
          %s241 = smul.u32 32, %s16
        $region40: #{rectified_flow_forward.1} parent=35 // pred_fallthru
          _
        // Predicated region
        $region41: #{rectified_flow_forward.1} parent=35 // pred_check
          %p242 = pneg %p62
        $region42: #{rectified_flow_forward.1} parent=35 // pred_check_branch
          %244 = sbr.rel (%p242) target = $region44
        $region43: #{rectified_flow_forward.1} parent=35 // pred_region
          %s245 = smul.u32 32, %s16
          %p246 = scmp.lt.s32.totalorder %s245, 63
          %s247 = scalar_select %p246, %s245, 63
          %s248 = smul.addr %s247, 8
          %s249 = scalar_lea.vmem %s1, %s248
          %s250 = smul.u32 32, %s16
        $region44: #{rectified_flow_forward.1} parent=35 // pred_fallthru
          _
      $region36: #{rectified_flow_forward.1} parent=5 // pred_fallthru
        _
      %p251 = scmp.le.s32.totalorder 1, %s16
      %p252 = scmp.lt.s32.totalorder %s16, 3
      %p253 = pnand %p251, %p252
      %p254 = pneg %p253
      // Predicated region
      $region45: #{rectified_flow_forward.1} parent=5 // pred_check
        _
      $region46: #{rectified_flow_forward.1} parent=5 // pred_check_branch
        %256 = sbr.rel (%p253) target = $region48
      $region47: #{rectified_flow_forward.1} parent=5 // pred_region
        %s257 = ssub.s32 %s16, 1
        %s258 = smul.u32 32, %s21
        %p259 = scmp.lt.s32.totalorder %s258, 63
        %s260 = scalar_select %p259, %s258, 63
        %s261 = smul.addr %s260, 4
        %s262 = scalar_lea.vmem %s0, %s261
        %p263 = pneg %p42
        %p264 = pneg %p39
        %s265 = smul.u32 32, %s21
        %p266 = scmp.lt.s32.totalorder %s265, 63
        %s267 = scalar_select %p266, %s265, 63
        %s268 = smul.addr %s267, 8
        %s269 = scalar_lea.vmem %s1, %s268
        %p270 = pneg %p68
        %p271 = pneg %p65
        %p272 = pneg %p89
        %p273 = pneg %p86
        %p274 = pneg %p110
        %p275 = pneg %p107
        %p276 = pneg %p131
        %p277 = pneg %p128
        %p278 = pneg %p152
        %p279 = pneg %p149
        %p280 = pneg %p173
        %p281 = pneg %p170
        %p282 = pneg %p199
        %p283 = pneg %p196
        %s284 = sand.u32 %s186, 1
        %s285 = scalar_lea.sflag [#allocation3], %s284
        %s286 = sand.u32 %s186, 1
        %s287 = smul.addr %s286, 256
        %s288 = scalar_lea.vmem [#allocation2], %s287
        %s289 = smul.u32 32, %s21
        %p290 = scmp.lt.s32.totalorder %s289, 63
        %s291 = scalar_select %p290, %s289, 63
        %s292 = smul.addr %s291, 4
        %s293 = scalar_lea.vmem %s0, %s292
        %s294 = smul.u32 32, %s21
        %s295 = smul.u32 32, %s21
        %p296 = scmp.lt.s32.totalorder %s295, 63
        %s297 = scalar_select %p296, %s295, 63
        %s298 = smul.addr %s297, 8
        %s299 = scalar_lea.vmem %s1, %s298
        %s300 = smul.u32 32, %s21
        %s301 = smul.u32 32, %s21
        %v303 = vld [vmem:[%s293] sm:$0xf]
        %v304 = vld [vmem:[%s293 + $0x4] sm:$0xf]
        %v305 = vld [vmem:[%s293 + $0x8] sm:$0xf]
        %v306 = vld [vmem:[%s293 + $0xc] sm:$0xf]
        %v307 = vld [vmem:[%s293 + $0x10] sm:$0xf]
        %v308 = vld [vmem:[%s293 + $0x14] sm:$0xf]
        %v309 = vld [vmem:[%s293 + $0x18] sm:$0xf]
        %v310 = vld [vmem:[%s293 + $0x1c] sm:$0xf]
        %v311 = vld [vmem:[%s293 + $0x20] sm:$0xf]
        %v312 = vld [vmem:[%s293 + $0x24] sm:$0xf]
        %v313 = vld [vmem:[%s293 + $0x28] sm:$0xf]
        %v314 = vld [vmem:[%s293 + $0x2c] sm:$0xf]
        %v315 = vld [vmem:[%s293 + $0x30] sm:$0xf]
        %v316 = vld [vmem:[%s293 + $0x34] sm:$0xf]
        %v317 = vld [vmem:[%s293 + $0x38] sm:$0xf]
        %v318 = vld [vmem:[%s293 + $0x3c] sm:$0xf]
        %v319 = vld [vmem:[%s293 + $0x40] sm:$0xf]
        %v320 = vld [vmem:[%s293 + $0x44] sm:$0xf]
        %v321 = vld [vmem:[%s293 + $0x48] sm:$0xf]
        %v322 = vld [vmem:[%s293 + $0x4c] sm:$0xf]
        %v323 = vld [vmem:[%s293 + $0x50] sm:$0xf]
        %v324 = vld [vmem:[%s293 + $0x54] sm:$0xf]
        %v325 = vld [vmem:[%s293 + $0x58] sm:$0xf]
        %v326 = vld [vmem:[%s293 + $0x5c] sm:$0xf]
        %v327 = vld [vmem:[%s293 + $0x60] sm:$0xf]
        %v328 = vld [vmem:[%s293 + $0x64] sm:$0xf]
        %v329 = vld [vmem:[%s293 + $0x68] sm:$0xf]
        %v330 = vld [vmem:[%s293 + $0x6c] sm:$0xf]
        %v331 = vld [vmem:[%s293 + $0x70] sm:$0xf]
        %v332 = vld [vmem:[%s293 + $0x74] sm:$0xf]
        %v333 = vld [vmem:[%s293 + $0x78] sm:$0xf]
        %v334 = vld [vmem:[%s293 + $0x7c] sm:$0xf]
        %v335 = vld [vmem:[%s2] sm:$0xff]
        %v336 = vld [vmem:[%s2 + $0x8] sm:$0xff]
        %v337 = vld [vmem:[%s2 + $0x10] sm:$0xff]
        %v338 = vld [vmem:[%s2 + $0x18] sm:$0xff]
        %v339 = vld [vmem:[%s2 + $0x20] sm:$0xff]
        %v340 = vld [vmem:[%s2 + $0x28] sm:$0xff]
        %v341 = vld [vmem:[%s2 + $0x30] sm:$0xff]
        %v342 = vld [vmem:[%s2 + $0x38] sm:$0xff]
        %v343 = vld [vmem:[%s2 + $0x40] sm:$0xff]
        %v344 = vld [vmem:[%s2 + $0x48] sm:$0xff]
        %v345 = vld [vmem:[%s2 + $0x50] sm:$0xff]
        %v346 = vld [vmem:[%s2 + $0x58] sm:$0xff]
        %v347 = vld [vmem:[%s2 + $0x60] sm:$0xff]
        %v348 = vld [vmem:[%s2 + $0x68] sm:$0xff]
        %v349 = vld [vmem:[%s2 + $0x70] sm:$0xff]
        %v350 = vld [vmem:[%s2 + $0x78] sm:$0xff]
        %v351 = vld [vmem:[%s299] sm:$0xff]
        %v352 = vld [vmem:[%s299 + $0x8] sm:$0xff]
        %v353 = vld [vmem:[%s299 + $0x10] sm:$0xff]
        %v354 = vld [vmem:[%s299 + $0x18] sm:$0xff]
        %v355 = vld [vmem:[%s299 + $0x20] sm:$0xff]
        %v356 = vld [vmem:[%s299 + $0x28] sm:$0xff]
        %v357 = vld [vmem:[%s299 + $0x30] sm:$0xff]
        %v358 = vld [vmem:[%s299 + $0x38] sm:$0xff]
        %v359 = vld [vmem:[%s299 + $0x40] sm:$0xff]
        %v360 = vld [vmem:[%s299 + $0x48] sm:$0xff]
        %v361 = vld [vmem:[%s299 + $0x50] sm:$0xff]
        %v362 = vld [vmem:[%s299 + $0x58] sm:$0xff]
        %v363 = vld [vmem:[%s299 + $0x60] sm:$0xff]
        %v364 = vld [vmem:[%s299 + $0x68] sm:$0xff]
        %v365 = vld [vmem:[%s299 + $0x70] sm:$0xff]
        %v366 = vld [vmem:[%s299 + $0x78] sm:$0xff]
        %v367 = vld [vmem:[%s299 + $0x80] sm:$0xff]
        %v368 = vld [vmem:[%s299 + $0x88] sm:$0xff]
        %v369 = vld [vmem:[%s299 + $0x90] sm:$0xff]
        %v370 = vld [vmem:[%s299 + $0x98] sm:$0xff]
        %v371 = vld [vmem:[%s299 + $0xa0] sm:$0xff]
        %v372 = vld [vmem:[%s299 + $0xa8] sm:$0xff]
        %v373 = vld [vmem:[%s299 + $0xb0] sm:$0xff]
        %v374 = vld [vmem:[%s299 + $0xb8] sm:$0xff]
        %v375 = vld [vmem:[%s299 + $0xc0] sm:$0xff]
        %v376 = vld [vmem:[%s299 + $0xc8] sm:$0xff]
        %v377 = vld [vmem:[%s299 + $0xd0] sm:$0xff]
        %v378 = vld [vmem:[%s299 + $0xd8] sm:$0xff]
        %v379 = vld [vmem:[%s299 + $0xe0] sm:$0xff]
        %v380 = vld [vmem:[%s299 + $0xe8] sm:$0xff]
        %v381 = vld [vmem:[%s299 + $0xf0] sm:$0xff]
        %v382 = vld [vmem:[%s299 + $0xf8] sm:$0xff]
        %v383 = vld [vmem:[%s3] sm:$0x3]
        %385 = vset.pattern.permute.xlu0 0
        %386 = vperm.xlu0 %385, %v351
        %v387 = vpop.permute.xlu0 %386
        %390 = vset.pattern.permute.xlu0 0
        %391 = vperm.xlu0 %390, %v352
        %v392 = vpop.permute.xlu0 %391
        %395 = vset.pattern.permute.xlu0 0
        %396 = vperm.xlu0 %395, %v353
        %v397 = vpop.permute.xlu0 %396
        %400 = vset.pattern.permute.xlu0 0
        %401 = vperm.xlu0 %400, %v354
        %v402 = vpop.permute.xlu0 %401
        %405 = vset.pattern.permute.xlu0 0
        %406 = vperm.xlu0 %405, %v355
        %v407 = vpop.permute.xlu0 %406
        %410 = vset.pattern.permute.xlu0 0
        %411 = vperm.xlu0 %410, %v356
        %v412 = vpop.permute.xlu0 %411
        %415 = vset.pattern.permute.xlu0 0
        %416 = vperm.xlu0 %415, %v357
        %v417 = vpop.permute.xlu0 %416
        %420 = vset.pattern.permute.xlu0 0
        %421 = vperm.xlu0 %420, %v358
        %v422 = vpop.permute.xlu0 %421
        %425 = vset.pattern.permute.xlu0 0
        %426 = vperm.xlu0 %425, %v359
        %v427 = vpop.permute.xlu0 %426
        %430 = vset.pattern.permute.xlu0 0
        %431 = vperm.xlu0 %430, %v360
        %v432 = vpop.permute.xlu0 %431
        %435 = vset.pattern.permute.xlu0 0
        %436 = vperm.xlu0 %435, %v361
        %v437 = vpop.permute.xlu0 %436
        %440 = vset.pattern.permute.xlu0 0
        %441 = vperm.xlu0 %440, %v362
        %v442 = vpop.permute.xlu0 %441
        %445 = vset.pattern.permute.xlu0 0
        %446 = vperm.xlu0 %445, %v363
        %v447 = vpop.permute.xlu0 %446
        %450 = vset.pattern.permute.xlu0 0
        %451 = vperm.xlu0 %450, %v364
        %v452 = vpop.permute.xlu0 %451
        %455 = vset.pattern.permute.xlu0 0
        %456 = vperm.xlu0 %455, %v365
        %v457 = vpop.permute.xlu0 %456
        %460 = vset.pattern.permute.xlu0 0
        %461 = vperm.xlu0 %460, %v366
        %v462 = vpop.permute.xlu0 %461
        %465 = vset.pattern.permute.xlu0 0
        %466 = vperm.xlu0 %465, %v367
        %v467 = vpop.permute.xlu0 %466
        %470 = vset.pattern.permute.xlu0 0
        %471 = vperm.xlu0 %470, %v368
        %v472 = vpop.permute.xlu0 %471
        %475 = vset.pattern.permute.xlu0 0
        %476 = vperm.xlu0 %475, %v369
        %v477 = vpop.permute.xlu0 %476
        %480 = vset.pattern.permute.xlu0 0
        %481 = vperm.xlu0 %480, %v370
        %v482 = vpop.permute.xlu0 %481
        %485 = vset.pattern.permute.xlu0 0
        %486 = vperm.xlu0 %485, %v371
        %v487 = vpop.permute.xlu0 %486
        %490 = vset.pattern.permute.xlu0 0
        %491 = vperm.xlu0 %490, %v372
        %v492 = vpop.permute.xlu0 %491
        %495 = vset.pattern.permute.xlu0 0
        %496 = vperm.xlu0 %495, %v373
        %v497 = vpop.permute.xlu0 %496
        %500 = vset.pattern.permute.xlu0 0
        %501 = vperm.xlu0 %500, %v374
        %v502 = vpop.permute.xlu0 %501
        %505 = vset.pattern.permute.xlu0 0
        %506 = vperm.xlu0 %505, %v375
        %v507 = vpop.permute.xlu0 %506
        %510 = vset.pattern.permute.xlu0 0
        %511 = vperm.xlu0 %510, %v376
        %v512 = vpop.permute.xlu0 %511
        %515 = vset.pattern.permute.xlu0 0
        %516 = vperm.xlu0 %515, %v377
        %v517 = vpop.permute.xlu0 %516
        %520 = vset.pattern.permute.xlu0 0
        %521 = vperm.xlu0 %520, %v378
        %v522 = vpop.permute.xlu0 %521
        %525 = vset.pattern.permute.xlu0 0
        %526 = vperm.xlu0 %525, %v379
        %v527 = vpop.permute.xlu0 %526
        %530 = vset.pattern.permute.xlu0 0
        %531 = vperm.xlu0 %530, %v380
        %v532 = vpop.permute.xlu0 %531
        %535 = vset.pattern.permute.xlu0 0
        %536 = vperm.xlu0 %535, %v381
        %v537 = vpop.permute.xlu0 %536
        %540 = vset.pattern.permute.xlu0 0
        %541 = vperm.xlu0 %540, %v382
        %v542 = vpop.permute.xlu0 %541
        %v545 = vlaneseq
        %v546 = vshrl.u32 %v545, 7
        %v547 = vsub.s32 0, %v546
        %v548 = vrot.slane %v383, %v547
        %v549 = vlaneseq
        %v550 = vshrl.u32 %v549, 7
        %v551 = vsub.s32 1, %v550
        %v552 = vrot.slane %v383, %v551
        %v555 = vmul.f32 %v387, %v548
        %v556 = vmul.f32 %v387, %v552
        %v557 = vmul.f32 %v392, %v548
        %v558 = vmul.f32 %v392, %v552
        %v559 = vmul.f32 %v397, %v548
        %v560 = vmul.f32 %v397, %v552
        %v561 = vmul.f32 %v402, %v548
        %v562 = vmul.f32 %v402, %v552
        %v563 = vmul.f32 %v407, %v548
        %v564 = vmul.f32 %v407, %v552
        %v565 = vmul.f32 %v412, %v548
        %v566 = vmul.f32 %v412, %v552
        %v567 = vmul.f32 %v417, %v548
        %v568 = vmul.f32 %v417, %v552
        %v569 = vmul.f32 %v422, %v548
        %v570 = vmul.f32 %v422, %v552
        %v571 = vmul.f32 %v427, %v548
        %v572 = vmul.f32 %v427, %v552
        %v573 = vmul.f32 %v432, %v548
        %v574 = vmul.f32 %v432, %v552
        %v575 = vmul.f32 %v437, %v548
        %v576 = vmul.f32 %v437, %v552
        %v577 = vmul.f32 %v442, %v548
        %v578 = vmul.f32 %v442, %v552
        %v579 = vmul.f32 %v447, %v548
        %v580 = vmul.f32 %v447, %v552
        %v581 = vmul.f32 %v452, %v548
        %v582 = vmul.f32 %v452, %v552
        %v583 = vmul.f32 %v457, %v548
        %v584 = vmul.f32 %v457, %v552
        %v585 = vmul.f32 %v462, %v548
        %v586 = vmul.f32 %v462, %v552
        %v587 = vmul.f32 %v467, %v548
        %v588 = vmul.f32 %v467, %v552
        %v589 = vmul.f32 %v472, %v548
        %v590 = vmul.f32 %v472, %v552
        %v591 = vmul.f32 %v477, %v548
        %v592 = vmul.f32 %v477, %v552
        %v593 = vmul.f32 %v482, %v548
        %v594 = vmul.f32 %v482, %v552
        %v595 = vmul.f32 %v487, %v548
        %v596 = vmul.f32 %v487, %v552
        %v597 = vmul.f32 %v492, %v548
        %v598 = vmul.f32 %v492, %v552
        %v599 = vmul.f32 %v497, %v548
        %v600 = vmul.f32 %v497, %v552
        %v601 = vmul.f32 %v502, %v548
        %v602 = vmul.f32 %v502, %v552
        %v603 = vmul.f32 %v507, %v548
        %v604 = vmul.f32 %v507, %v552
        %v605 = vmul.f32 %v512, %v548
        %v606 = vmul.f32 %v512, %v552
        %v607 = vmul.f32 %v517, %v548
        %v608 = vmul.f32 %v517, %v552
        %v609 = vmul.f32 %v522, %v548
        %v610 = vmul.f32 %v522, %v552
        %v611 = vmul.f32 %v527, %v548
        %v612 = vmul.f32 %v527, %v552
        %v613 = vmul.f32 %v532, %v548
        %v614 = vmul.f32 %v532, %v552
        %v615 = vmul.f32 %v537, %v548
        %v616 = vmul.f32 %v537, %v552
        %v617 = vmul.f32 %v542, %v548
        %v618 = vmul.f32 %v542, %v552
        %v651 = vunpack.c.l.b16 %v303
        %v652 = vunpack.c.l.b16 %v304
        %v653 = vunpack.c.l.b16 %v305
        %v654 = vunpack.c.l.b16 %v306
        %v655 = vunpack.c.l.b16 %v307
        %v656 = vunpack.c.l.b16 %v308
        %v657 = vunpack.c.l.b16 %v309
        %v658 = vunpack.c.l.b16 %v310
        %v659 = vunpack.c.l.b16 %v311
        %v660 = vunpack.c.l.b16 %v312
        %v661 = vunpack.c.l.b16 %v313
        %v662 = vunpack.c.l.b16 %v314
        %v663 = vunpack.c.l.b16 %v315
        %v664 = vunpack.c.l.b16 %v316
        %v665 = vunpack.c.l.b16 %v317
        %v666 = vunpack.c.l.b16 %v318
        %v667 = vunpack.c.l.b16 %v319
        %v668 = vunpack.c.l.b16 %v320
        %v669 = vunpack.c.l.b16 %v321
        %v670 = vunpack.c.l.b16 %v322
        %v671 = vunpack.c.l.b16 %v323
        %v672 = vunpack.c.l.b16 %v324
        %v673 = vunpack.c.l.b16 %v325
        %v674 = vunpack.c.l.b16 %v326
        %v675 = vunpack.c.l.b16 %v327
        %v676 = vunpack.c.l.b16 %v328
        %v677 = vunpack.c.l.b16 %v329
        %v678 = vunpack.c.l.b16 %v330
        %v679 = vunpack.c.l.b16 %v331
        %v680 = vunpack.c.l.b16 %v332
        %v681 = vunpack.c.l.b16 %v333
        %v682 = vunpack.c.l.b16 %v334
        %v683 = vpack.c.b16 %v652, %v651
        %v684 = vpack.c.b16 %v654, %v653
        %v685 = vpack.c.b16 %v656, %v655
        %v686 = vpack.c.b16 %v658, %v657
        %v687 = vpack.c.b16 %v660, %v659
        %v688 = vpack.c.b16 %v662, %v661
        %v689 = vpack.c.b16 %v664, %v663
        %v690 = vpack.c.b16 %v666, %v665
        %v691 = vpack.c.b16 %v668, %v667
        %v692 = vpack.c.b16 %v670, %v669
        %v693 = vpack.c.b16 %v672, %v671
        %v694 = vpack.c.b16 %v674, %v673
        %v695 = vpack.c.b16 %v676, %v675
        %v696 = vpack.c.b16 %v678, %v677
        %v697 = vpack.c.b16 %v680, %v679
        %v698 = vpack.c.b16 %v682, %v681
        %v731 = vunpack.c.l.b16 %v335
        %v732 = vunpack.c.h.b16 %v335
        %v733 = vunpack.c.l.b16 %v336
        %v734 = vunpack.c.h.b16 %v336
        %v735 = vunpack.c.l.b16 %v337
        %v736 = vunpack.c.h.b16 %v337
        %v737 = vunpack.c.l.b16 %v338
        %v738 = vunpack.c.h.b16 %v338
        %v739 = vunpack.c.l.b16 %v339
        %v740 = vunpack.c.h.b16 %v339
        %v741 = vunpack.c.l.b16 %v340
        %v742 = vunpack.c.h.b16 %v340
        %v743 = vunpack.c.l.b16 %v341
        %v744 = vunpack.c.h.b16 %v341
        %v745 = vunpack.c.l.b16 %v342
        %v746 = vunpack.c.h.b16 %v342
        %v747 = vunpack.c.l.b16 %v343
        %v748 = vunpack.c.h.b16 %v343
        %v749 = vunpack.c.l.b16 %v344
        %v750 = vunpack.c.h.b16 %v344
        %v751 = vunpack.c.l.b16 %v345
        %v752 = vunpack.c.h.b16 %v345
        %v753 = vunpack.c.l.b16 %v346
        %v754 = vunpack.c.h.b16 %v346
        %v755 = vunpack.c.l.b16 %v347
        %v756 = vunpack.c.h.b16 %v347
        %v757 = vunpack.c.l.b16 %v348
        %v758 = vunpack.c.h.b16 %v348
        %v759 = vunpack.c.l.b16 %v349
        %v760 = vunpack.c.h.b16 %v349
        %v761 = vunpack.c.l.b16 %v350
        %v762 = vunpack.c.h.b16 %v350
        %v763 = vpack.c.b16 %v733, %v731
        %v764 = vpack.c.b16 %v734, %v732
        %v765 = vpack.c.b16 %v737, %v735
        %v766 = vpack.c.b16 %v738, %v736
        %v767 = vpack.c.b16 %v741, %v739
        %v768 = vpack.c.b16 %v742, %v740
        %v769 = vpack.c.b16 %v745, %v743
        %v770 = vpack.c.b16 %v746, %v744
        %v771 = vpack.c.b16 %v749, %v747
        %v772 = vpack.c.b16 %v750, %v748
        %v773 = vpack.c.b16 %v753, %v751
        %v774 = vpack.c.b16 %v754, %v752
        %v775 = vpack.c.b16 %v757, %v755
        %v776 = vpack.c.b16 %v758, %v756
        %v777 = vpack.c.b16 %v761, %v759
        %v778 = vpack.c.b16 %v762, %v760
        %795 = vmatprep.subr.bf16.mxu0 %v764
        %796 = vmatpush1.bf16.msra.mxu0 %v763
        %797 = vmatprep.subr.bf16.mxu0 %v766
        %798 = vmatpush1.bf16.msra.mxu0 %v765
        %799 = vmatprep.subr.bf16.mxu0 %v768
        %800 = vmatpush1.bf16.msra.mxu0 %v767
        %801 = vmatprep.subr.bf16.mxu0 %v770
        %802 = vmatpush1.bf16.msra.mxu0 %v769
        %803 = vmatprep.subr.bf16.mxu0 %v772
        %804 = vmatpush1.bf16.msra.mxu0 %v771
        %805 = vmatprep.subr.bf16.mxu0 %v774
        %806 = vmatpush1.bf16.msra.mxu0 %v773
        %807 = vmatprep.subr.bf16.mxu0 %v776
        %808 = vmatpush1.bf16.msra.mxu0 %v775
        %809 = vmatprep.subr.bf16.mxu0 %v778
        %810 = vmatpush1.bf16.msra.mxu0 %v777
        %811 = vmatprep.subr.bf16.mxu0 0
        %812 = vmatpush1.bf16.msra.mxu0 0
        %813 = vmatprep.subr.bf16.mxu0 0
        %814 = vmatpush1.bf16.msra.mxu0 0
        %815 = vmatprep.subr.bf16.mxu0 0
        %816 = vmatpush1.bf16.msra.mxu0 0
        %817 = vmatprep.subr.bf16.mxu0 0
        %818 = vmatpush1.bf16.msra.mxu0 0
        %819 = vmatprep.subr.bf16.mxu0 0
        %820 = vmatpush1.bf16.msra.mxu0 0
        %821 = vmatprep.subr.bf16.mxu0 0
        %822 = vmatpush1.bf16.msra.mxu0 0
        %823 = vmatprep.subr.bf16.mxu0 0
        %824 = vmatpush1.bf16.msra.mxu0 0
        %825 = vmatprep.subr.bf16.mxu0 0
        %826 = vmatpush1.bf16.msra.mxu0 0
        %827 = vmatprep.mubr.bf16.mxu0 0
        %828 = vmatmul.mubr.bf16.gmra.mrb[0].mxu0 %v683
        %v829 = vpop.f32.mrb[0].mxu0
        %v830 = vadd.f32 %v555, %v829
        %v831 = vpop.f32.mrb[0].mxu0
        %v832 = vadd.f32 %v556, %v831
        %v833 = vpop.f32.mrb[0].mxu0
        %v834 = vadd.f32 %v557, %v833
        %v835 = vpop.f32.mrb[0].mxu0
        %v836 = vadd.f32 %v558, %v835
        %837 = vmatprep.mubr.bf16.mxu0 0
        %838 = vmatmul.mubr.bf16.gmra.mrb[0].mxu0 %v684
        %v839 = vpop.f32.mrb[0].mxu0
        %v840 = vadd.f32 %v559, %v839
        %v841 = vpop.f32.mrb[0].mxu0
        %v842 = vadd.f32 %v560, %v841
        %v843 = vpop.f32.mrb[0].mxu0
        %v844 = vadd.f32 %v561, %v843
        %v845 = vpop.f32.mrb[0].mxu0
        %v846 = vadd.f32 %v562, %v845
        %847 = vmatprep.mubr.bf16.mxu0 0
        %848 = vmatmul.mubr.bf16.gmra.mrb[0].mxu0 %v685
        %v849 = vpop.f32.mrb[0].mxu0
        %v850 = vadd.f32 %v563, %v849
        %v851 = vpop.f32.mrb[0].mxu0
        %v852 = vadd.f32 %v564, %v851
        %v853 = vpop.f32.mrb[0].mxu0
        %v854 = vadd.f32 %v565, %v853
        %v855 = vpop.f32.mrb[0].mxu0
        %v856 = vadd.f32 %v566, %v855
        %857 = vmatprep.mubr.bf16.mxu0 0
        %858 = vmatmul.mubr.bf16.gmra.mrb[0].mxu0 %v686
        %v859 = vpop.f32.mrb[0].mxu0
        %v860 = vadd.f32 %v567, %v859
        %v861 = vpop.f32.mrb[0].mxu0
        %v862 = vadd.f32 %v568, %v861
        %v863 = vpop.f32.mrb[0].mxu0
        %v864 = vadd.f32 %v569, %v863
        %v865 = vpop.f32.mrb[0].mxu0
        %v866 = vadd.f32 %v570, %v865
        %867 = vmatprep.mubr.bf16.mxu0 0
        %868 = vmatmul.mubr.bf16.gmra.mrb[0].mxu0 %v687
        %v869 = vpop.f32.mrb[0].mxu0
        %v870 = vadd.f32 %v571, %v869
        %v871 = vpop.f32.mrb[0].mxu0
        %v872 = vadd.f32 %v572, %v871
        %v873 = vpop.f32.mrb[0].mxu0
        %v874 = vadd.f32 %v573, %v873
        %v875 = vpop.f32.mrb[0].mxu0
        %v876 = vadd.f32 %v574, %v875
        %877 = vmatprep.mubr.bf16.mxu0 0
        %878 = vmatmul.mubr.bf16.gmra.mrb[0].mxu0 %v688
        %v879 = vpop.f32.mrb[0].mxu0
        %v880 = vadd.f32 %v575, %v879
        %v881 = vpop.f32.mrb[0].mxu0
        %v882 = vadd.f32 %v576, %v881
        %v883 = vpop.f32.mrb[0].mxu0
        %v884 = vadd.f32 %v577, %v883
        %v885 = vpop.f32.mrb[0].mxu0
        %v886 = vadd.f32 %v578, %v885
        %887 = vmatprep.mubr.bf16.mxu0 0
        %888 = vmatmul.mubr.bf16.gmra.mrb[0].mxu0 %v689
        %v889 = vpop.f32.mrb[0].mxu0
        %v890 = vadd.f32 %v579, %v889
        %v891 = vpop.f32.mrb[0].mxu0
        %v892 = vadd.f32 %v580, %v891
        %v893 = vpop.f32.mrb[0].mxu0
        %v894 = vadd.f32 %v581, %v893
        %v895 = vpop.f32.mrb[0].mxu0
        %v896 = vadd.f32 %v582, %v895
        %897 = vmatprep.mubr.bf16.mxu0 0
        %898 = vmatmul.mubr.bf16.gmra.mrb[0].mxu0 %v690
        %v899 = vpop.f32.mrb[0].mxu0
        %v900 = vadd.f32 %v583, %v899
        %v901 = vpop.f32.mrb[0].mxu0
        %v902 = vadd.f32 %v584, %v901
        %v903 = vpop.f32.mrb[0].mxu0
        %v904 = vadd.f32 %v585, %v903
        %v905 = vpop.f32.mrb[0].mxu0
        %v906 = vadd.f32 %v586, %v905
        %907 = vmatprep.mubr.bf16.mxu0 0
        %908 = vmatmul.mubr.bf16.gmra.mrb[0].mxu0 %v691
        %v909 = vpop.f32.mrb[0].mxu0
        %v910 = vadd.f32 %v587, %v909
        %v911 = vpop.f32.mrb[0].mxu0
        %v912 = vadd.f32 %v588, %v911
        %v913 = vpop.f32.mrb[0].mxu0
        %v914 = vadd.f32 %v589, %v913
        %v915 = vpop.f32.mrb[0].mxu0
        %v916 = vadd.f32 %v590, %v915
        %917 = vmatprep.mubr.bf16.mxu0 0
        %918 = vmatmul.mubr.bf16.gmra.mrb[0].mxu0 %v692
        %v919 = vpop.f32.mrb[0].mxu0
        %v920 = vadd.f32 %v591, %v919
        %v921 = vpop.f32.mrb[0].mxu0
        %v922 = vadd.f32 %v592, %v921
        %v923 = vpop.f32.mrb[0].mxu0
        %v924 = vadd.f32 %v593, %v923
        %v925 = vpop.f32.mrb[0].mxu0
        %v926 = vadd.f32 %v594, %v925
        %927 = vmatprep.mubr.bf16.mxu0 0
        %928 = vmatmul.mubr.bf16.gmra.mrb[0].mxu0 %v693
        %v929 = vpop.f32.mrb[0].mxu0
        %v930 = vadd.f32 %v595, %v929
        %v931 = vpop.f32.mrb[0].mxu0
        %v932 = vadd.f32 %v596, %v931
        %v933 = vpop.f32.mrb[0].mxu0
        %v934 = vadd.f32 %v597, %v933
        %v935 = vpop.f32.mrb[0].mxu0
        %v936 = vadd.f32 %v598, %v935
        %937 = vmatprep.mubr.bf16.mxu0 0
        %938 = vmatmul.mubr.bf16.gmra.mrb[0].mxu0 %v694
        %v939 = vpop.f32.mrb[0].mxu0
        %v940 = vadd.f32 %v599, %v939
        %v941 = vpop.f32.mrb[0].mxu0
        %v942 = vadd.f32 %v600, %v941
        %v943 = vpop.f32.mrb[0].mxu0
        %v944 = vadd.f32 %v601, %v943
        %v945 = vpop.f32.mrb[0].mxu0
        %v946 = vadd.f32 %v602, %v945
        %947 = vmatprep.mubr.bf16.mxu0 0
        %948 = vmatmul.mubr.bf16.gmra.mrb[0].mxu0 %v695
        %v949 = vpop.f32.mrb[0].mxu0
        %v950 = vadd.f32 %v603, %v949
        %v951 = vpop.f32.mrb[0].mxu0
        %v952 = vadd.f32 %v604, %v951
        %v953 = vpop.f32.mrb[0].mxu0
        %v954 = vadd.f32 %v605, %v953
        %v955 = vpop.f32.mrb[0].mxu0
        %v956 = vadd.f32 %v606, %v955
        %957 = vmatprep.mubr.bf16.mxu0 0
        %958 = vmatmul.mubr.bf16.gmra.mrb[0].mxu0 %v696
        %v959 = vpop.f32.mrb[0].mxu0
        %v960 = vadd.f32 %v607, %v959
        %v961 = vpop.f32.mrb[0].mxu0
        %v962 = vadd.f32 %v608, %v961
        %v963 = vpop.f32.mrb[0].mxu0
        %v964 = vadd.f32 %v609, %v963
        %v965 = vpop.f32.mrb[0].mxu0
        %v966 = vadd.f32 %v610, %v965
        %967 = vmatprep.mubr.bf16.mxu0 0
        %968 = vmatmul.mubr.bf16.gmra.mrb[0].mxu0 %v697
        %v969 = vpop.f32.mrb[0].mxu0
        %v970 = vadd.f32 %v611, %v969
        %v971 = vpop.f32.mrb[0].mxu0
        %v972 = vadd.f32 %v612, %v971
        %v973 = vpop.f32.mrb[0].mxu0
        %v974 = vadd.f32 %v613, %v973
        %v975 = vpop.f32.mrb[0].mxu0
        %v976 = vadd.f32 %v614, %v975
        %977 = vmatprep.mubr.bf16.mxu0 0
        %978 = vmatmul.mubr.bf16.gmra.mrb[0].mxu0 %v698
        %v979 = vpop.f32.mrb[0].mxu0
        %v980 = vadd.f32 %v615, %v979
        %v981 = vpop.f32.mrb[0].mxu0
        %v982 = vadd.f32 %v616, %v981
        %v983 = vpop.f32.mrb[0].mxu0
        %v984 = vadd.f32 %v617, %v983
        %v985 = vpop.f32.mrb[0].mxu0
        %v986 = vadd.f32 %v618, %v985
        %987 = vdwg.mxu0
        %v988 = vld [vmem:[%s4] sm:$0x3]
        %v990 = vlaneseq
        %v991 = vshrl.u32 %v990, 7
        %v992 = vsub.s32 0, %v991
        %v993 = vrot.slane %v988, %v992
        %v994 = vlaneseq
        %v995 = vshrl.u32 %v994, 7
        %v996 = vsub.s32 1, %v995
        %v997 = vrot.slane %v988, %v996
        %v1000 = vadd.f32 %v830, %v993
        %v1001 = vadd.f32 %v832, %v997
        %v1002 = vadd.f32 %v834, %v993
        %v1003 = vadd.f32 %v836, %v997
        %v1004 = vadd.f32 %v840, %v993
        %v1005 = vadd.f32 %v842, %v997
        %v1006 = vadd.f32 %v844, %v993
        %v1007 = vadd.f32 %v846, %v997
        %v1008 = vadd.f32 %v850, %v993
        %v1009 = vadd.f32 %v852, %v997
        %v1010 = vadd.f32 %v854, %v993
        %v1011 = vadd.f32 %v856, %v997
        %v1012 = vadd.f32 %v860, %v993
        %v1013 = vadd.f32 %v862, %v997
        %v1014 = vadd.f32 %v864, %v993
        %v1015 = vadd.f32 %v866, %v997
        %v1016 = vadd.f32 %v870, %v993
        %v1017 = vadd.f32 %v872, %v997
        %v1018 = vadd.f32 %v874, %v993
        %v1019 = vadd.f32 %v876, %v997
        %v1020 = vadd.f32 %v880, %v993
        %v1021 = vadd.f32 %v882, %v997
        %v1022 = vadd.f32 %v884, %v993
        %v1023 = vadd.f32 %v886, %v997
        %v1024 = vadd.f32 %v890, %v993
        %v1025 = vadd.f32 %v892, %v997
        %v1026 = vadd.f32 %v894, %v993
        %v1027 = vadd.f32 %v896, %v997
        %v1028 = vadd.f32 %v900, %v993
        %v1029 = vadd.f32 %v902, %v997
        %v1030 = vadd.f32 %v904, %v993
        %v1031 = vadd.f32 %v906, %v997
        %v1032 = vadd.f32 %v910, %v993
        %v1033 = vadd.f32 %v912, %v997
        %v1034 = vadd.f32 %v914, %v993
        %v1035 = vadd.f32 %v916, %v997
        %v1036 = vadd.f32 %v920, %v993
        %v1037 = vadd.f32 %v922, %v997
        %v1038 = vadd.f32 %v924, %v993
        %v1039 = vadd.f32 %v926, %v997
        %v1040 = vadd.f32 %v930, %v993
        %v1041 = vadd.f32 %v932, %v997
        %v1042 = vadd.f32 %v934, %v993
        %v1043 = vadd.f32 %v936, %v997
        %v1044 = vadd.f32 %v940, %v993
        %v1045 = vadd.f32 %v942, %v997
        %v1046 = vadd.f32 %v944, %v993
        %v1047 = vadd.f32 %v946, %v997
        %v1048 = vadd.f32 %v950, %v993
        %v1049 = vadd.f32 %v952, %v997
        %v1050 = vadd.f32 %v954, %v993
        %v1051 = vadd.f32 %v956, %v997
        %v1052 = vadd.f32 %v960, %v993
        %v1053 = vadd.f32 %v962, %v997
        %v1054 = vadd.f32 %v964, %v993
        %v1055 = vadd.f32 %v966, %v997
        %v1056 = vadd.f32 %v970, %v993
        %v1057 = vadd.f32 %v972, %v997
        %v1058 = vadd.f32 %v974, %v993
        %v1059 = vadd.f32 %v976, %v997
        %v1060 = vadd.f32 %v980, %v993
        %v1061 = vadd.f32 %v982, %v997
        %v1062 = vadd.f32 %v984, %v993
        %v1063 = vadd.f32 %v986, %v997
        %v1064 = vmax.f32 %v1000, 0.0
        %v1065 = vmax.f32 %v1001, 0.0
        %v1066 = vmax.f32 %v1002, 0.0
        %v1067 = vmax.f32 %v1003, 0.0
        %v1068 = vmax.f32 %v1004, 0.0
        %v1069 = vmax.f32 %v1005, 0.0
        %v1070 = vmax.f32 %v1006, 0.0
        %v1071 = vmax.f32 %v1007, 0.0
        %v1072 = vmax.f32 %v1008, 0.0
        %v1073 = vmax.f32 %v1009, 0.0
        %v1074 = vmax.f32 %v1010, 0.0
        %v1075 = vmax.f32 %v1011, 0.0
        %v1076 = vmax.f32 %v1012, 0.0
        %v1077 = vmax.f32 %v1013, 0.0
        %v1078 = vmax.f32 %v1014, 0.0
        %v1079 = vmax.f32 %v1015, 0.0
        %v1080 = vmax.f32 %v1016, 0.0
        %v1081 = vmax.f32 %v1017, 0.0
        %v1082 = vmax.f32 %v1018, 0.0
        %v1083 = vmax.f32 %v1019, 0.0
        %v1084 = vmax.f32 %v1020, 0.0
        %v1085 = vmax.f32 %v1021, 0.0
        %v1086 = vmax.f32 %v1022, 0.0
        %v1087 = vmax.f32 %v1023, 0.0
        %v1088 = vmax.f32 %v1024, 0.0
        %v1089 = vmax.f32 %v1025, 0.0
        %v1090 = vmax.f32 %v1026, 0.0
        %v1091 = vmax.f32 %v1027, 0.0
        %v1092 = vmax.f32 %v1028, 0.0
        %v1093 = vmax.f32 %v1029, 0.0
        %v1094 = vmax.f32 %v1030, 0.0
        %v1095 = vmax.f32 %v1031, 0.0
        %v1096 = vmax.f32 %v1032, 0.0
        %v1097 = vmax.f32 %v1033, 0.0
        %v1098 = vmax.f32 %v1034, 0.0
        %v1099 = vmax.f32 %v1035, 0.0
        %v1100 = vmax.f32 %v1036, 0.0
        %v1101 = vmax.f32 %v1037, 0.0
        %v1102 = vmax.f32 %v1038, 0.0
        %v1103 = vmax.f32 %v1039, 0.0
        %v1104 = vmax.f32 %v1040, 0.0
        %v1105 = vmax.f32 %v1041, 0.0
        %v1106 = vmax.f32 %v1042, 0.0
        %v1107 = vmax.f32 %v1043, 0.0
        %v1108 = vmax.f32 %v1044, 0.0
        %v1109 = vmax.f32 %v1045, 0.0
        %v1110 = vmax.f32 %v1046, 0.0
        %v1111 = vmax.f32 %v1047, 0.0
        %v1112 = vmax.f32 %v1048, 0.0
        %v1113 = vmax.f32 %v1049, 0.0
        %v1114 = vmax.f32 %v1050, 0.0
        %v1115 = vmax.f32 %v1051, 0.0
        %v1116 = vmax.f32 %v1052, 0.0
        %v1117 = vmax.f32 %v1053, 0.0
        %v1118 = vmax.f32 %v1054, 0.0
        %v1119 = vmax.f32 %v1055, 0.0
        %v1120 = vmax.f32 %v1056, 0.0
        %v1121 = vmax.f32 %v1057, 0.0
        %v1122 = vmax.f32 %v1058, 0.0
        %v1123 = vmax.f32 %v1059, 0.0
        %v1124 = vmax.f32 %v1060, 0.0
        %v1125 = vmax.f32 %v1061, 0.0
        %v1126 = vmax.f32 %v1062, 0.0
        %v1127 = vmax.f32 %v1063, 0.0
        %v1128 = vpack.c.bf16 %v1066, %v1064
        %v1129 = vpack.c.bf16 %v1067, %v1065
        %v1130 = vpack.c.bf16 %v1070, %v1068
        %v1131 = vpack.c.bf16 %v1071, %v1069
        %v1132 = vpack.c.bf16 %v1074, %v1072
        %v1133 = vpack.c.bf16 %v1075, %v1073
        %v1134 = vpack.c.bf16 %v1078, %v1076
        %v1135 = vpack.c.bf16 %v1079, %v1077
        %v1136 = vpack.c.bf16 %v1082, %v1080
        %v1137 = vpack.c.bf16 %v1083, %v1081
        %v1138 = vpack.c.bf16 %v1086, %v1084
        %v1139 = vpack.c.bf16 %v1087, %v1085
        %v1140 = vpack.c.bf16 %v1090, %v1088
        %v1141 = vpack.c.bf16 %v1091, %v1089
        %v1142 = vpack.c.bf16 %v1094, %v1092
        %v1143 = vpack.c.bf16 %v1095, %v1093
        %v1144 = vpack.c.bf16 %v1098, %v1096
        %v1145 = vpack.c.bf16 %v1099, %v1097
        %v1146 = vpack.c.bf16 %v1102, %v1100
        %v1147 = vpack.c.bf16 %v1103, %v1101
        %v1148 = vpack.c.bf16 %v1106, %v1104
        %v1149 = vpack.c.bf16 %v1107, %v1105
        %v1150 = vpack.c.bf16 %v1110, %v1108
        %v1151 = vpack.c.bf16 %v1111, %v1109
        %v1152 = vpack.c.bf16 %v1114, %v1112
        %v1153 = vpack.c.bf16 %v1115, %v1113
        %v1154 = vpack.c.bf16 %v1118, %v1116
        %v1155 = vpack.c.bf16 %v1119, %v1117
        %v1156 = vpack.c.bf16 %v1122, %v1120
        %v1157 = vpack.c.bf16 %v1123, %v1121
        %v1158 = vpack.c.bf16 %v1126, %v1124
        %v1159 = vpack.c.bf16 %v1127, %v1125
        %v1160 = vld [vmem:[%s5] sm:$0xf]
        %v1161 = vld [vmem:[%s5 + $0x4] sm:$0xf]
        %v1162 = vld [vmem:[%s5 + $0x8] sm:$0xf]
        %v1163 = vld [vmem:[%s5 + $0xc] sm:$0xf]
        %v1164 = vld [vmem:[%s5 + $0x10] sm:$0xf]
        %v1165 = vld [vmem:[%s5 + $0x14] sm:$0xf]
        %v1166 = vld [vmem:[%s5 + $0x18] sm:$0xf]
        %v1167 = vld [vmem:[%s5 + $0x1c] sm:$0xf]
        %v1168 = vld [vmem:[%s5 + $0x20] sm:$0xf]
        %v1169 = vld [vmem:[%s5 + $0x24] sm:$0xf]
        %v1170 = vld [vmem:[%s5 + $0x28] sm:$0xf]
        %v1171 = vld [vmem:[%s5 + $0x2c] sm:$0xf]
        %v1172 = vld [vmem:[%s5 + $0x30] sm:$0xf]
        %v1173 = vld [vmem:[%s5 + $0x34] sm:$0xf]
        %v1174 = vld [vmem:[%s5 + $0x38] sm:$0xf]
        %v1175 = vld [vmem:[%s5 + $0x3c] sm:$0xf]
        %v1176 = vld [vmem:[%s5 + $0x40] sm:$0xf]
        %v1177 = vld [vmem:[%s5 + $0x44] sm:$0xf]
        %v1178 = vld [vmem:[%s5 + $0x48] sm:$0xf]
        %v1179 = vld [vmem:[%s5 + $0x4c] sm:$0xf]
        %v1180 = vld [vmem:[%s5 + $0x50] sm:$0xf]
        %v1181 = vld [vmem:[%s5 + $0x54] sm:$0xf]
        %v1182 = vld [vmem:[%s5 + $0x58] sm:$0xf]
        %v1183 = vld [vmem:[%s5 + $0x5c] sm:$0xf]
        %v1184 = vld [vmem:[%s5 + $0x60] sm:$0xf]
        %v1185 = vld [vmem:[%s5 + $0x64] sm:$0xf]
        %v1186 = vld [vmem:[%s5 + $0x68] sm:$0xf]
        %v1187 = vld [vmem:[%s5 + $0x6c] sm:$0xf]
        %v1188 = vld [vmem:[%s5 + $0x70] sm:$0xf]
        %v1189 = vld [vmem:[%s5 + $0x74] sm:$0xf]
        %v1190 = vld [vmem:[%s5 + $0x78] sm:$0xf]
        %v1191 = vld [vmem:[%s5 + $0x7c] sm:$0xf]
        %v1192 = vld [vmem:[%s6] sm:$0x1]
        %v1194 = vlaneseq
        %v1195 = vshrl.u32 %v1194, 7
        %v1196 = vsub.s32 0, %v1195
        %v1197 = vrot.slane %v1192, %v1196
        %v1231 = vunpack.c.l.b16 %v1160
        %v1232 = vunpack.c.l.b16 %v1161
        %v1233 = vunpack.c.l.b16 %v1162
        %v1234 = vunpack.c.l.b16 %v1163
        %v1235 = vunpack.c.l.b16 %v1164
        %v1236 = vunpack.c.l.b16 %v1165
        %v1237 = vunpack.c.l.b16 %v1166
        %v1238 = vunpack.c.l.b16 %v1167
        %v1239 = vunpack.c.l.b16 %v1168
        %v1240 = vunpack.c.l.b16 %v1169
        %v1241 = vunpack.c.l.b16 %v1170
        %v1242 = vunpack.c.l.b16 %v1171
        %v1243 = vunpack.c.l.b16 %v1172
        %v1244 = vunpack.c.l.b16 %v1173
        %v1245 = vunpack.c.l.b16 %v1174
        %v1246 = vunpack.c.l.b16 %v1175
        %v1247 = vunpack.c.l.b16 %v1176
        %v1248 = vunpack.c.l.b16 %v1177
        %v1249 = vunpack.c.l.b16 %v1178
        %v1250 = vunpack.c.l.b16 %v1179
        %v1251 = vunpack.c.l.b16 %v1180
        %v1252 = vunpack.c.l.b16 %v1181
        %v1253 = vunpack.c.l.b16 %v1182
        %v1254 = vunpack.c.l.b16 %v1183
        %v1255 = vunpack.c.l.b16 %v1184
        %v1256 = vunpack.c.l.b16 %v1185
        %v1257 = vunpack.c.l.b16 %v1186
        %v1258 = vunpack.c.l.b16 %v1187
        %v1259 = vunpack.c.l.b16 %v1188
        %v1260 = vunpack.c.l.b16 %v1189
        %v1261 = vunpack.c.l.b16 %v1190
        %v1262 = vunpack.c.l.b16 %v1191
        %v1263 = vpack.c.b16 %v1232, %v1231
        %v1264 = vpack.c.b16 %v1234, %v1233
        %v1265 = vpack.c.b16 %v1236, %v1235
        %v1266 = vpack.c.b16 %v1238, %v1237
        %v1267 = vpack.c.b16 %v1240, %v1239
        %v1268 = vpack.c.b16 %v1242, %v1241
        %v1269 = vpack.c.b16 %v1244, %v1243
        %v1270 = vpack.c.b16 %v1246, %v1245
        %v1271 = vpack.c.b16 %v1248, %v1247
        %v1272 = vpack.c.b16 %v1250, %v1249
        %v1273 = vpack.c.b16 %v1252, %v1251
        %v1274 = vpack.c.b16 %v1254, %v1253
        %v1275 = vpack.c.b16 %v1256, %v1255
        %v1276 = vpack.c.b16 %v1258, %v1257
        %v1277 = vpack.c.b16 %v1260, %v1259
        %v1278 = vpack.c.b16 %v1262, %v1261
        %1295 = vmatprep.subr.bf16.mxu0 0
        %1296 = vmatpush1.bf16.msra.mxu0 %v1263
        %1297 = vmatprep.subr.bf16.mxu0 0
        %1298 = vmatpush1.bf16.msra.mxu0 %v1264
        %1299 = vmatprep.subr.bf16.mxu0 0
        %1300 = vmatpush1.bf16.msra.mxu0 %v1265
        %1301 = vmatprep.subr.bf16.mxu0 0
        %1302 = vmatpush1.bf16.msra.mxu0 %v1266
        %1303 = vmatprep.subr.bf16.mxu0 0
        %1304 = vmatpush1.bf16.msra.mxu0 %v1267
        %1305 = vmatprep.subr.bf16.mxu0 0
        %1306 = vmatpush1.bf16.msra.mxu0 %v1268
        %1307 = vmatprep.subr.bf16.mxu0 0
        %1308 = vmatpush1.bf16.msra.mxu0 %v1269
        %1309 = vmatprep.subr.bf16.mxu0 0
        %1310 = vmatpush1.bf16.msra.mxu0 %v1270
        %1311 = vmatprep.subr.bf16.mxu0 0
        %1312 = vmatpush1.bf16.msra.mxu0 %v1271
        %1313 = vmatprep.subr.bf16.mxu0 0
        %1314 = vmatpush1.bf16.msra.mxu0 %v1272
        %1315 = vmatprep.subr.bf16.mxu0 0
        %1316 = vmatpush1.bf16.msra.mxu0 %v1273
        %1317 = vmatprep.subr.bf16.mxu0 0
        %1318 = vmatpush1.bf16.msra.mxu0 %v1274
        %1319 = vmatprep.subr.bf16.mxu0 0
        %1320 = vmatpush1.bf16.msra.mxu0 %v1275
        %1321 = vmatprep.subr.bf16.mxu0 0
        %1322 = vmatpush1.bf16.msra.mxu0 %v1276
        %1323 = vmatprep.subr.bf16.mxu0 0
        %1324 = vmatpush1.bf16.msra.mxu0 %v1277
        %1325 = vmatprep.subr.bf16.mxu0 0
        %1326 = vmatpush1.bf16.msra.mxu0 %v1278
        %1327 = vmatprep.mubr.bf16.mxu0 %v1129
        %1328 = vmatmul.mubr.bf16.gmra.mrb[0].mxu0 %v1128
        %v1329 = vpop.f32.mrb[0].mxu0
        %v1330 = vadd.f32 %v1197, %v1329
        %v1331 = vpop.f32.mrb[0].mxu0
        %v1332 = vpop.f32.mrb[0].mxu0
        %v1333 = vadd.f32 %v1197, %v1332
        %v1334 = vpop.f32.mrb[0].mxu0
        %1335 = vmatprep.mubr.bf16.mxu0 %v1131
        %1336 = vmatmul.mubr.bf16.gmra.mrb[0].mxu0 %v1130
        %v1337 = vpop.f32.mrb[0].mxu0
        %v1338 = vadd.f32 %v1197, %v1337
        %v1339 = vpop.f32.mrb[0].mxu0
        %v1340 = vpop.f32.mrb[0].mxu0
        %v1341 = vadd.f32 %v1197, %v1340
        %v1342 = vpop.f32.mrb[0].mxu0
        %1343 = vmatprep.mubr.bf16.mxu0 %v1133
        %1344 = vmatmul.mubr.bf16.gmra.mrb[0].mxu0 %v1132
        %v1345 = vpop.f32.mrb[0].mxu0
        %v1346 = vadd.f32 %v1197, %v1345
        %v1347 = vpop.f32.mrb[0].mxu0
        %v1348 = vpop.f32.mrb[0].mxu0
        %v1349 = vadd.f32 %v1197, %v1348
        %v1350 = vpop.f32.mrb[0].mxu0
        %1351 = vmatprep.mubr.bf16.mxu0 %v1135
        %1352 = vmatmul.mubr.bf16.gmra.mrb[0].mxu0 %v1134
        %v1353 = vpop.f32.mrb[0].mxu0
        %v1354 = vadd.f32 %v1197, %v1353
        %v1355 = vpop.f32.mrb[0].mxu0
        %v1356 = vpop.f32.mrb[0].mxu0
        %v1357 = vadd.f32 %v1197, %v1356
        %v1358 = vpop.f32.mrb[0].mxu0
        %1359 = vmatprep.mubr.bf16.mxu0 %v1137
        %1360 = vmatmul.mubr.bf16.gmra.mrb[0].mxu0 %v1136
        %v1361 = vpop.f32.mrb[0].mxu0
        %v1362 = vadd.f32 %v1197, %v1361
        %v1363 = vpop.f32.mrb[0].mxu0
        %v1364 = vpop.f32.mrb[0].mxu0
        %v1365 = vadd.f32 %v1197, %v1364
        %v1366 = vpop.f32.mrb[0].mxu0
        %1367 = vmatprep.mubr.bf16.mxu0 %v1139
        %1368 = vmatmul.mubr.bf16.gmra.mrb[0].mxu0 %v1138
        %v1369 = vpop.f32.mrb[0].mxu0
        %v1370 = vadd.f32 %v1197, %v1369
        %v1371 = vpop.f32.mrb[0].mxu0
        %v1372 = vpop.f32.mrb[0].mxu0
        %v1373 = vadd.f32 %v1197, %v1372
        %v1374 = vpop.f32.mrb[0].mxu0
        %1375 = vmatprep.mubr.bf16.mxu0 %v1141
        %1376 = vmatmul.mubr.bf16.gmra.mrb[0].mxu0 %v1140
        %v1377 = vpop.f32.mrb[0].mxu0
        %v1378 = vadd.f32 %v1197, %v1377
        %v1379 = vpop.f32.mrb[0].mxu0
        %v1380 = vpop.f32.mrb[0].mxu0
        %v1381 = vadd.f32 %v1197, %v1380
        %v1382 = vpop.f32.mrb[0].mxu0
        %1383 = vmatprep.mubr.bf16.mxu0 %v1143
        %1384 = vmatmul.mubr.bf16.gmra.mrb[0].mxu0 %v1142
        %v1385 = vpop.f32.mrb[0].mxu0
        %v1386 = vadd.f32 %v1197, %v1385
        %v1387 = vpop.f32.mrb[0].mxu0
        %v1388 = vpop.f32.mrb[0].mxu0
        %v1389 = vadd.f32 %v1197, %v1388
        %v1390 = vpop.f32.mrb[0].mxu0
        %1391 = vmatprep.mubr.bf16.mxu0 %v1145
        %1392 = vmatmul.mubr.bf16.gmra.mrb[0].mxu0 %v1144
        %v1393 = vpop.f32.mrb[0].mxu0
        %v1394 = vadd.f32 %v1197, %v1393
        %v1395 = vpop.f32.mrb[0].mxu0
        %v1396 = vpop.f32.mrb[0].mxu0
        %v1397 = vadd.f32 %v1197, %v1396
        %v1398 = vpop.f32.mrb[0].mxu0
        %1399 = vmatprep.mubr.bf16.mxu0 %v1147
        %1400 = vmatmul.mubr.bf16.gmra.mrb[0].mxu0 %v1146
        %v1401 = vpop.f32.mrb[0].mxu0
        %v1402 = vadd.f32 %v1197, %v1401
        %v1403 = vpop.f32.mrb[0].mxu0
        %v1404 = vpop.f32.mrb[0].mxu0
        %v1405 = vadd.f32 %v1197, %v1404
        %v1406 = vpop.f32.mrb[0].mxu0
        %1407 = vmatprep.mubr.bf16.mxu0 %v1149
        %1408 = vmatmul.mubr.bf16.gmra.mrb[0].mxu0 %v1148
        %v1409 = vpop.f32.mrb[0].mxu0
        %v1410 = vadd.f32 %v1197, %v1409
        %v1411 = vpop.f32.mrb[0].mxu0
        %v1412 = vpop.f32.mrb[0].mxu0
        %v1413 = vadd.f32 %v1197, %v1412
        %v1414 = vpop.f32.mrb[0].mxu0
        %1415 = vmatprep.mubr.bf16.mxu0 %v1151
        %1416 = vmatmul.mubr.bf16.gmra.mrb[0].mxu0 %v1150
        %v1417 = vpop.f32.mrb[0].mxu0
        %v1418 = vadd.f32 %v1197, %v1417
        %v1419 = vpop.f32.mrb[0].mxu0
        %v1420 = vpop.f32.mrb[0].mxu0
        %v1421 = vadd.f32 %v1197, %v1420
        %v1422 = vpop.f32.mrb[0].mxu0
        %1423 = vmatprep.mubr.bf16.mxu0 %v1153
        %1424 = vmatmul.mubr.bf16.gmra.mrb[0].mxu0 %v1152
        %v1425 = vpop.f32.mrb[0].mxu0
        %v1426 = vadd.f32 %v1197, %v1425
        %v1427 = vpop.f32.mrb[0].mxu0
        %v1428 = vpop.f32.mrb[0].mxu0
        %v1429 = vadd.f32 %v1197, %v1428
        %v1430 = vpop.f32.mrb[0].mxu0
        %1431 = vmatprep.mubr.bf16.mxu0 %v1155
        %1432 = vmatmul.mubr.bf16.gmra.mrb[0].mxu0 %v1154
        %v1433 = vpop.f32.mrb[0].mxu0
        %v1434 = vadd.f32 %v1197, %v1433
        %v1435 = vpop.f32.mrb[0].mxu0
        %v1436 = vpop.f32.mrb[0].mxu0
        %v1437 = vadd.f32 %v1197, %v1436
        %v1438 = vpop.f32.mrb[0].mxu0
        %1439 = vmatprep.mubr.bf16.mxu0 %v1157
        %1440 = vmatmul.mubr.bf16.gmra.mrb[0].mxu0 %v1156
        %v1441 = vpop.f32.mrb[0].mxu0
        %v1442 = vadd.f32 %v1197, %v1441
        %v1443 = vpop.f32.mrb[0].mxu0
        %v1444 = vpop.f32.mrb[0].mxu0
        %v1445 = vadd.f32 %v1197, %v1444
        %v1446 = vpop.f32.mrb[0].mxu0
        %1447 = vmatprep.mubr.bf16.mxu0 %v1159
        %1448 = vmatmul.mubr.bf16.gmra.mrb[0].mxu0 %v1158
        %v1449 = vpop.f32.mrb[0].mxu0
        %v1450 = vadd.f32 %v1197, %v1449
        %v1451 = vpop.f32.mrb[0].mxu0
        %v1452 = vpop.f32.mrb[0].mxu0
        %v1453 = vadd.f32 %v1197, %v1452
        %v1454 = vpop.f32.mrb[0].mxu0
        %1455 = vdwg.mxu0
        %1456 = vst [vmem:[%s288] sm:$0xff] %v1330
        %1457 = vst [vmem:[%s288 + $0x8] sm:$0xff] %v1333
        %1458 = vst [vmem:[%s288 + $0x10] sm:$0xff] %v1338
        %1459 = vst [vmem:[%s288 + $0x18] sm:$0xff] %v1341
        %1460 = vst [vmem:[%s288 + $0x20] sm:$0xff] %v1346
        %1461 = vst [vmem:[%s288 + $0x28] sm:$0xff] %v1349
        %1462 = vst [vmem:[%s288 + $0x30] sm:$0xff] %v1354
        %1463 = vst [vmem:[%s288 + $0x38] sm:$0xff] %v1357
        %1464 = vst [vmem:[%s288 + $0x40] sm:$0xff] %v1362
        %1465 = vst [vmem:[%s288 + $0x48] sm:$0xff] %v1365
        %1466 = vst [vmem:[%s288 + $0x50] sm:$0xff] %v1370
        %1467 = vst [vmem:[%s288 + $0x58] sm:$0xff] %v1373
        %1468 = vst [vmem:[%s288 + $0x60] sm:$0xff] %v1378
        %1469 = vst [vmem:[%s288 + $0x68] sm:$0xff] %v1381
        %1470 = vst [vmem:[%s288 + $0x70] sm:$0xff] %v1386
        %1471 = vst [vmem:[%s288 + $0x78] sm:$0xff] %v1389
        %1472 = vst [vmem:[%s288 + $0x80] sm:$0xff] %v1394
        %1473 = vst [vmem:[%s288 + $0x88] sm:$0xff] %v1397
        %1474 = vst [vmem:[%s288 + $0x90] sm:$0xff] %v1402
        %1475 = vst [vmem:[%s288 + $0x98] sm:$0xff] %v1405
        %1476 = vst [vmem:[%s288 + $0xa0] sm:$0xff] %v1410
        %1477 = vst [vmem:[%s288 + $0xa8] sm:$0xff] %v1413
        %1478 = vst [vmem:[%s288 + $0xb0] sm:$0xff] %v1418
        %1479 = vst [vmem:[%s288 + $0xb8] sm:$0xff] %v1421
        %1480 = vst [vmem:[%s288 + $0xc0] sm:$0xff] %v1426
        %1481 = vst [vmem:[%s288 + $0xc8] sm:$0xff] %v1429
        %1482 = vst [vmem:[%s288 + $0xd0] sm:$0xff] %v1434
        %1483 = vst [vmem:[%s288 + $0xd8] sm:$0xff] %v1437
        %1484 = vst [vmem:[%s288 + $0xe0] sm:$0xff] %v1442
        %1485 = vst [vmem:[%s288 + $0xe8] sm:$0xff] %v1445
        %1486 = vst [vmem:[%s288 + $0xf0] sm:$0xff] %v1450
        %1487 = vst [vmem:[%s288 + $0xf8] sm:$0xff] %v1453
        %s1488 = sand.u32 %s186, 1
        %s1489 = scalar_lea.sflag [#allocation3], %s1488
        %s1490 = sand.u32 %s186, 1
        %s1491 = smul.addr %s1490, 256
        %s1492 = scalar_lea.vmem [#allocation2], %s1491
        // Predicated region
        $region49: #{rectified_flow_forward.1} parent=47 // pred_check
          %p1493 = pneg %p196
        $region50: #{rectified_flow_forward.1} parent=47 // pred_check_branch
          %1495 = sbr.rel (%p1493) target = $region52
        $region51: #{rectified_flow_forward.1} parent=47 // pred_region
          %s1496 = smul.u32 32, %s21
          %s1498 = ssub.s32 4096, 4096
          %1499 = vsyncadd %s1489, %s1498
          %s1500 = smul.addr %s1496, 128
          %s1501 = scalar_lea.hbm %s7, %s1500
          %s1502 = sshll.u32 %s1492, 4
          %s1503 = int_to_ptr.vmem [resolvable:$true] %s1502
          %1508 = dma.vmem_to_hbm [thread:$0]  %s1503, 4096, %s1501, %s1489, 128, 128, 8
        $region52: #{rectified_flow_forward.1} parent=47 // pred_fallthru
          _
      $region48: #{rectified_flow_forward.1} parent=5 // pred_fallthru
        _
      %p1509 = scmp.le.s32.totalorder 2, %s16
      // Predicated region
      $region53: #{rectified_flow_forward.1} parent=5 // pred_check
        %p1510 = pneg %p1509
      $region54: #{rectified_flow_forward.1} parent=5 // pred_check_branch
        %1512 = sbr.rel (%p1510) target = $region56
      $region55: #{rectified_flow_forward.1} parent=5 // pred_region
        %s1513 = ssub.s32 %s16, 2
        // Predicated region
        $region57: #{rectified_flow_forward.1} parent=55 // pred_check
          %p1514 = pneg %p202
        $region58: #{rectified_flow_forward.1} parent=55 // pred_check_branch
          %1516 = sbr.rel (%p1514) target = $region60
        $region59: #{rectified_flow_forward.1} parent=55 // pred_region
          %s1517 = sand.u32 %s187, 1
          %s1518 = scalar_lea.sflag [#allocation3], %s1517
          %s1519 = sand.u32 %s187, 1
          %s1520 = smul.addr %s1519, 256
          %s1521 = scalar_lea.vmem [#allocation2], %s1520
          %1522 = dma.done %s1518, 4096
        $region60: #{rectified_flow_forward.1} parent=55 // pred_fallthru
          _
      $region56: #{rectified_flow_forward.1} parent=5 // pred_fallthru
        _
    $region6: #{rectified_flow_forward.1} parent=1 // loop_footer
      %s20 = sadd.s32 1, %s16
    $region7: #{rectified_flow_forward.1} parent=1 // loop_footer_branch
      %15 = sbr.rel target = $region3
    $region8: #{rectified_flow_forward.1} parent=1 // loop_exit
      _
    %1523 = vsyncpa [#allocation3], 1
    %s1524 = scalar_lea.sflag [#allocation3], 1
    %1525 = vsyncpa %s1524, 1

</llo_original>
